<compile_context>
chip_gen: v7x
topology: tpu7x:2x2x1
jax: 0.10.0
libtpu: 0.0.40
codegen_flags: <defaults>
</compile_context>

<pallas_src>
import functools

import jax
import jax.numpy as jnp
from jax import lax
from jax.experimental import pallas as pl
from jax.experimental.pallas import tpu as pltpu


def _sdpa_kernel(q_ref, k_ref, v_ref, *rest, inv_temperature, use_softmax,
                 has_mask, return_attn, bf16_matmul, approx_recip):
    # Blocks: q (1, TQ, D), k (1, Lk, D), v (1, Lk, Dv), [mask (1, TQ, Lk) int8],
    #         out (1, TQ, Dv), [attn (1, TQ, Lk)].
    rest = list(rest)
    mask_ref = rest.pop(0) if has_mask else None
    if return_attn:
        out_ref, attn_ref = rest
    else:
        (out_ref,) = rest
        attn_ref = None

    q = q_ref[0]                                   # (TQ, D)
    k = k_ref[0]                                   # (Lk, D)
    v = v_ref[0]                                   # (Lk, Dv)

    # Fold 1/temperature into q when q is f32 (TQ*D mults, no extra rounding before the
    # bf16 cast); for low-precision q scale the f32 scores instead to avoid an extra
    # low-precision rounding.
    scale_scores = False
    if q.dtype == jnp.float32:
        q = q * jnp.float32(inv_temperature)
        if bf16_matmul:
            q = q.astype(jnp.bfloat16)
            k = k.astype(jnp.bfloat16)
    else:
        scale_scores = True

    # scores = q @ k^T, contracting the D axes directly (no XLU transpose), f32 acc.
    scores = lax.dot_general(
        q, k,
        dimension_numbers=(((1,), (1,)), ((), ())),
        preferred_element_type=jnp.float32)        # (TQ, Lk)
    if scale_scores:
        scores = scores * jnp.float32(inv_temperature)

    if has_mask:
        # masked_fill(attn_mask, -1e6); mask streamed as int8, nonzero == masked.
        scores = jnp.where(mask_ref[0] != 0, jnp.float32(-1000000.0), scores)

    if use_softmax:
        # Numerically stable softmax over the key axis (dim=2), f32 math.
        m = jnp.max(scores, axis=-1, keepdims=True)
        e = jnp.exp(scores - m)
        denom = jnp.sum(e, axis=-1, keepdims=True)
        if approx_recip:
            attn = e * pl.reciprocal(denom, approx=True)   # EUP vrcp (free slot)
        else:
            attn = e / denom                               # exact, matches reference
    else:
        attn = jax.nn.sigmoid(scores)

    # output = attn @ v on the MXU, f32 accumulation; bf16 operands when allowed.
    if bf16_matmul and v.dtype == jnp.float32:
        v = v.astype(jnp.bfloat16)
    out = jnp.dot(attn.astype(v.dtype), v, preferred_element_type=jnp.float32)

    out_ref[0] = out.astype(out_ref.dtype)
    if return_attn:
        attn_ref[0] = attn.astype(attn_ref.dtype)


def scaled_dot_product_attention(q, k, v, attn_mask=None, *,
                                 temperature,
                                 attn_type="softmax",
                                 tq_max=256,
                                 use_bf16_matmul=True,
                                 attn_dtype=None,
                                 return_attn=True,
                                 approx_reciprocal=False,
                                 kv_buffer_count=2,
                                 vmem_limit_bytes=64 * 1024 * 1024):
    """q: [B, Lq, D], k: [B, Lk, D], v: [B, Lk, Dv], attn_mask: [B, Lq, Lk] (truthy = masked).

    Generation notes: v6e (128 MiB VMEM, 1 TC) can raise tq_max (e.g. 512) and
    vmem_limit_bytes; v7x (64 MiB VMEM, 2 TCs) should keep tq_max at 256 and set
    kv_buffer_count=1 (k/v block index is grid-invariant along the q-tile axis).
    """
    B, Lq, D = q.shape
    _, Lk, _ = k.shape
    Dv = v.shape[-1]
    has_mask = attn_mask is not None
    if attn_dtype is None:
        attn_dtype = q.dtype

    # ---- query-tile selection --------------------------------------------------
    if Lq <= tq_max:
        tq = Lq
    else:
        tq = max(8, (tq_max // 8) * 8)
    qt = pl.cdiv(Lq, tq)
    # Guarantee >= 2 parallel grid programs (v7x has 2 TensorCores per chip).
    if B * qt < 2 and Lq >= 64:
        tq = max(32, ((pl.cdiv(Lq, 2) + 31) // 32) * 32)
        qt = pl.cdiv(Lq, tq)

    kernel = functools.partial(
        _sdpa_kernel,
        inv_temperature=1.0 / float(temperature),
        use_softmax=(attn_type == "softmax"),
        has_mask=has_mask,
        return_attn=return_attn,
        bf16_matmul=bool(use_bf16_matmul),
        approx_recip=bool(approx_reciprocal),
    )

    # ---- BlockSpecs --------------------------------------------------------------
    kv_kwargs = {}
    if kv_buffer_count != 2:
        # k/v blocks only change at batch boundaries; single-buffering saves VMEM.
        kv_kwargs["pipeline_mode"] = pl.Buffered(int(kv_buffer_count))

    in_specs = [
        pl.BlockSpec((1, tq, D), lambda b, i: (b, i, 0)),                 # q tile
        pl.BlockSpec((1, Lk, D), lambda b, i: (b, 0, 0), **kv_kwargs),    # full k
        pl.BlockSpec((1, Lk, Dv), lambda b, i: (b, 0, 0), **kv_kwargs),   # full v
    ]
    args = [q, k, v]
    if has_mask:
        m = attn_mask
        if m.dtype == jnp.bool_:
            m = m.astype(jnp.int8)                 # 1 B/elem DMA stream
        elif not jnp.issubdtype(m.dtype, jnp.integer):
            m = (m != 0).astype(jnp.int8)          # float masks: truthy == masked
        in_specs.append(pl.BlockSpec((1, tq, Lk), lambda b, i: (b, i, 0)))
        args.append(m)

    out_specs = [pl.BlockSpec((1, tq, Dv), lambda b, i: (b, i, 0))]
    out_shapes = [jax.ShapeDtypeStruct((B, Lq, Dv), q.dtype)]
    if return_attn:
        out_specs.append(pl.BlockSpec((1, tq, Lk), lambda b, i: (b, i, 0)))
        out_shapes.append(jax.ShapeDtypeStruct((B, Lq, Lk), attn_dtype))

    grid_spec = pltpu.PrefetchScalarGridSpec(
        num_scalar_prefetch=0,
        grid=(B, qt),
        in_specs=in_specs,
        out_specs=out_specs,
    )

    results = pl.pallas_call(
        kernel,
        grid_spec=grid_spec,
        out_shape=tuple(out_shapes),
        compiler_params=pltpu.CompilerParams(
            dimension_semantics=("parallel", "parallel"),
            vmem_limit_bytes=int(vmem_limit_bytes)),
    )(*args)

    if return_attn:
        out, attn = results
        return out, attn
    return results[0], None


def _reference(q, k, v, attn_mask, temperature):
    scores = jnp.einsum("bqd,bkd->bqk", q, k) / temperature
    if attn_mask is not None:
        scores = jnp.where(attn_mask, -1000000.0, scores)
    attn = jax.nn.softmax(scores, axis=2)
    return jnp.einsum("bqk,bkd->bqd", attn, v), attn


if __name__ == "__main__":
    key = jax.random.PRNGKey(0)
    B, Lq, Lk, D, Dv = 2, 8, 8, 32, 32
    temperature = float(D) ** 0.5

    kq, kk, kv, km = jax.random.split(key, 4)
    q = jax.random.normal(kq, (B, Lq, D), dtype=jnp.float32)
    k = jax.random.normal(kk, (B, Lk, D), dtype=jnp.float32)
    v = jax.random.normal(kv, (B, Lk, Dv), dtype=jnp.float32)
    attn_mask = jax.random.bernoulli(km, 0.2, (B, Lq, Lk))

    ref_out, ref_attn = _reference(q, k, v, attn_mask, temperature)
    ref_out_nm, ref_attn_nm = _reference(q, k, v, None, temperature)

    # 1) Exact fp32 MXU path with mask: parity with the PyTorch/JAX reference.
    out, attn = scaled_dot_product_attention(
        q, k, v, attn_mask, temperature=temperature, attn_type="softmax",
        use_bf16_matmul=False)
    jax.block_until_ready((out, attn))
    assert jnp.allclose(out, ref_out, atol=2e-3, rtol=2e-3)
    assert jnp.allclose(attn, ref_attn, atol=2e-3, rtol=2e-3)

    # 2) Fast bf16-operand MXU path (default): loose tolerance for bf16 rounding.
    out_f, attn_f = scaled_dot_product_attention(
        q, k, v, attn_mask, temperature=temperature, attn_type="softmax",
        use_bf16_matmul=True)
    jax.block_until_ready((out_f, attn_f))
    assert jnp.allclose(out_f, ref_out, atol=3e-2, rtol=3e-2)
    assert jnp.allclose(attn_f, ref_attn, atol=3e-2, rtol=3e-2)

    # 3) No-mask compiled variant (no mask HBM stream at all).
    out_nm, attn_nm = scaled_dot_product_attention(
        q, k, v, None, temperature=temperature, attn_type="softmax")
    jax.block_until_ready((out_nm, attn_nm))
    assert jnp.allclose(out_nm, ref_out_nm, atol=3e-2, rtol=3e-2)
    assert jnp.allclose(attn_nm, ref_attn_nm, atol=3e-2, rtol=3e-2)

    # 4) attn writeback skipped (caller discards attn): output only.
    out_na, attn_na = scaled_dot_product_attention(
        q, k, v, attn_mask, temperature=temperature, attn_type="softmax",
        return_attn=False)
    jax.block_until_ready(out_na)
    assert attn_na is None
    assert jnp.allclose(out_na, ref_out, atol=3e-2, rtol=3e-2)

    print("KERNEL_OK")
</pallas_src>

<mosaic_0001>
module attributes {stable_mosaic.version = 11 : i64} {
  func.func @_sdpa_kernel(%arg0: i32, %arg1: i32, %arg2: memref<1x8x32xf32, #tpu.memory_space<vmem>>, %arg3: memref<1x8x32xf32, #tpu.memory_space<vmem>>, %arg4: memref<1x8x32xf32, #tpu.memory_space<vmem>>, %arg5: memref<1x8x8xi8, #tpu.memory_space<vmem>>, %arg6: memref<1x8x32xf32, #tpu.memory_space<vmem>>, %arg7: memref<1x8x8xf32, #tpu.memory_space<vmem>>) attributes {dimension_semantics = [#tpu.dimension_semantics<parallel>, #tpu.dimension_semantics<parallel>], iteration_bounds = array<i64: 2, 1>, scalar_prefetch = 0 : i64, scratch_operands = 0 : i64, tpu.core_type = #tpu.core_type<tc>, window_params = [{transform_indices = @transform_0, window_bounds = array<i64: 1, 8, 32>}, {transform_indices = @transform_1, window_bounds = array<i64: 1, 8, 32>}, {transform_indices = @transform_2, window_bounds = array<i64: 1, 8, 32>}, {transform_indices = @transform_3, window_bounds = array<i64: 1, 8, 8>}, {transform_indices = @transform_4, window_bounds = array<i64: 1, 8, 32>}, {transform_indices = @transform_5, window_bounds = array<i64: 1, 8, 8>}]} {
    %c0 = arith.constant 0 : index
    %c0_0 = arith.constant 0 : index
    %c0_1 = arith.constant 0 : index
    %0 = vector.load %arg2[%c0, %c0_0, %c0_1] : memref<1x8x32xf32, #tpu.memory_space<vmem>>, vector<1x8x32xf32>
    %1 = vector.shape_cast %0 : vector<1x8x32xf32> to vector<8x32xf32>
    %c0_2 = arith.constant 0 : index
    %c0_3 = arith.constant 0 : index
    %c0_4 = arith.constant 0 : index
    %2 = vector.load %arg3[%c0_2, %c0_3, %c0_4] : memref<1x8x32xf32, #tpu.memory_space<vmem>>, vector<1x8x32xf32>
    %3 = vector.shape_cast %2 : vector<1x8x32xf32> to vector<8x32xf32>
    %c0_5 = arith.constant 0 : index
    %c0_6 = arith.constant 0 : index
    %c0_7 = arith.constant 0 : index
    %4 = vector.load %arg4[%c0_5, %c0_6, %c0_7] : memref<1x8x32xf32, #tpu.memory_space<vmem>>, vector<1x8x32xf32>
    %5 = vector.shape_cast %4 : vector<1x8x32xf32> to vector<8x32xf32>
    %cst = arith.constant 0.176776692 : f32
    %6 = vector.broadcast %cst : f32 to vector<8x32xf32>
    %7 = arith.mulf %1, %6 : vector<8x32xf32>
    %cst_8 = arith.constant dense<0.000000e+00> : vector<8x8xf32>
    %8 = tpu.matmul %7, %3, %cst_8 {dimension_numbers = #tpu.dot_dimension_numbers<[1], [1], [0], [0], [0, 0, 1, 0], [], []>} : vector<8x32xf32>, vector<8x32xf32>, vector<8x8xf32> -> vector<8x8xf32>
    %c0_9 = arith.constant 0 : index
    %c0_10 = arith.constant 0 : index
    %c0_11 = arith.constant 0 : index
    %9 = vector.load %arg5[%c0_9, %c0_10, %c0_11] : memref<1x8x8xi8, #tpu.memory_space<vmem>>, vector<1x8x8xi8>
    %10 = vector.shape_cast %9 : vector<1x8x8xi8> to vector<8x8xi8>
    %c0_i8 = arith.constant 0 : i8
    %11 = vector.broadcast %c0_i8 : i8 to vector<8x8xi8>
    %12 = arith.cmpi ne, %10, %11 : vector<8x8xi8>
    %cst_12 = arith.constant -1.000000e+06 : f32
    %13 = vector.broadcast %cst_12 : f32 to vector<8x8xf32>
    %14 = arith.select %12, %13, %8 : vector<8x8xi1>, vector<8x8xf32>
    %cst_13 = arith.constant dense<0xFF800000> : vector<8xf32>
    %15 = vector.multi_reduction <maximumf>, %14, %cst_13 [1] : vector<8x8xf32> to vector<8xf32>
    %16 = vector.shape_cast %15 : vector<8xf32> to vector<8x1xf32>
    %17 = vector.broadcast %16 : vector<8x1xf32> to vector<8x8xf32>
    %18 = arith.subf %14, %17 : vector<8x8xf32>
    %19 = math.exp %18 : vector<8x8xf32>
    %cst_14 = arith.constant dense<0.000000e+00> : vector<8xf32>
    %20 = vector.multi_reduction <add>, %19, %cst_14 [1] : vector<8x8xf32> to vector<8xf32>
    %21 = vector.shape_cast %20 : vector<8xf32> to vector<8x1xf32>
    %22 = vector.broadcast %21 : vector<8x1xf32> to vector<8x8xf32>
    %23 = arith.divf %19, %22 : vector<8x8xf32>
    %cst_15 = arith.constant dense<0.000000e+00> : vector<8x32xf32>
    %24 = tpu.matmul %23, %5, %cst_15 {dimension_numbers = #tpu.dot_dimension_numbers<[1], [0], [0], [1], [0, 0, 1, 1], [], []>} : vector<8x8xf32>, vector<8x32xf32>, vector<8x32xf32> -> vector<8x32xf32>
    %c0_16 = arith.constant 0 : index
    %c0_17 = arith.constant 0 : index
    %c0_18 = arith.constant 0 : index
    %25 = vector.load %arg6[%c0_16, %c0_17, %c0_18] : memref<1x8x32xf32, #tpu.memory_space<vmem>>, vector<1x8x32xf32>
    %26 = vector.shape_cast %25 : vector<1x8x32xf32> to vector<8x32xf32>
    %27 = vector.shape_cast %24 : vector<8x32xf32> to vector<1x8x32xf32>
    tpu.vector_store %arg6[%c0_16, %c0_17, %c0_18], %27 {strides = array<i32>} : memref<1x8x32xf32, #tpu.memory_space<vmem>>, vector<1x8x32xf32>,
    %c0_19 = arith.constant 0 : index
    %c0_20 = arith.constant 0 : index
    %c0_21 = arith.constant 0 : index
    %28 = vector.load %arg7[%c0_19, %c0_20, %c0_21] : memref<1x8x8xf32, #tpu.memory_space<vmem>>, vector<1x8x8xf32>
    %29 = vector.shape_cast %28 : vector<1x8x8xf32> to vector<8x8xf32>
    %30 = vector.shape_cast %23 : vector<8x8xf32> to vector<1x8x8xf32>
    tpu.vector_store %arg7[%c0_19, %c0_20, %c0_21], %30 {strides = array<i32>} : memref<1x8x8xf32, #tpu.memory_space<vmem>>, vector<1x8x8xf32>,
    return
  }
  func.func @transform_0(%arg0: i32, %arg1: i32) -> (i32, i32, i32) {
    %c0_i32 = arith.constant 0 : i32
    %c0_i32_0 = arith.constant 0 : i32
    return %arg0, %arg1, %c0_i32 : i32, i32, i32
  }
  func.func @transform_1(%arg0: i32, %arg1: i32) -> (i32, i32, i32) {
    %c0_i32 = arith.constant 0 : i32
    %c0_i32_0 = arith.constant 0 : i32
    %c0_i32_1 = arith.constant 0 : i32
    return %arg0, %c0_i32, %c0_i32_0 : i32, i32, i32
  }
  func.func @transform_2(%arg0: i32, %arg1: i32) -> (i32, i32, i32) {
    %c0_i32 = arith.constant 0 : i32
    %c0_i32_0 = arith.constant 0 : i32
    %c0_i32_1 = arith.constant 0 : i32
    return %arg0, %c0_i32, %c0_i32_0 : i32, i32, i32
  }
  func.func @transform_3(%arg0: i32, %arg1: i32) -> (i32, i32, i32) {
    %c0_i32 = arith.constant 0 : i32
    %c0_i32_0 = arith.constant 0 : i32
    return %arg0, %arg1, %c0_i32 : i32, i32, i32
  }
  func.func @transform_4(%arg0: i32, %arg1: i32) -> (i32, i32, i32) {
    %c0_i32 = arith.constant 0 : i32
    %c0_i32_0 = arith.constant 0 : i32
    return %arg0, %arg1, %c0_i32 : i32, i32, i32
  }
  func.func @transform_5(%arg0: i32, %arg1: i32) -> (i32, i32, i32) {
    %c0_i32 = arith.constant 0 : i32
    %c0_i32_0 = arith.constant 0 : i32
    return %arg0, %arg1, %c0_i32 : i32, i32, i32
  }
}

</mosaic_0001>

<llo_original>
// kernel: tpu_custom_call.1
$region0: #{tpu_custom_call.1}
  #allocation0 [shape = 'u32[]', space=smem, size = 0x4, offset = 0x4, fixed_abs, tag = 'smem constant byte address 0x4 - core index']
  #allocation1 [shape = 'u32[144,128]{1,0:T(1,128)}', space=vmem, size = 0x12000, scoped, tag = 'internal scratch']
  %s0 = inlined_call_operand.hbm [shape: f32[2,8,32], index: 0, kind: input, shape index: {}]
  %s1 = inlined_call_operand.hbm [shape: f32[2,8,32], index: 1, kind: input, shape index: {}]
  %s2 = inlined_call_operand.hbm [shape: f32[2,8,32], index: 2, kind: input, shape index: {}]
  %s3 = inlined_call_operand.hbm [shape: s8[2,8,8], index: 3, kind: input, shape index: {}]
  %s4 = inlined_call_operand.hbm [shape: f32[2,8,32], index: 4, kind: output, shape index: {0}]
  %s5 = inlined_call_operand.hbm [shape: f32[2,8,8], index: 5, kind: output, shape index: {1}]
  %6 = xla_tuple %s4, %s5
  %s7 = sld [smem:[#allocation0]]
  $region73: #{tpu_custom_call.1} parent=0
    _
  %s9 = ssub.s32 1, %s7
  %s10 = scalar_select 0, %s9, %s7
  $region1: #{tpu_custom_call.1} parent=0
    #allocation2 [shape = 'u8[8192]{0}', space=vmem, size = 0x2000, scoped, tag = 'input window, operand 0']
    #allocation3 [shape = 's32[2]{0}', space=sflag, size = 0x8, scoped, tag = 'scoped memory for tpu_custom_call.1']
    #allocation4 [shape = 's32[2]{0}', space=sflag, size = 0x8, scoped, tag = 'scoped memory for tpu_custom_call.1']
    #allocation5 [shape = 'u8[8192]{0}', space=vmem, size = 0x2000, scoped, tag = 'input window, operand 1']
    #allocation6 [shape = 's32[2]{0}', space=sflag, size = 0x8, scoped, tag = 'scoped memory for tpu_custom_call.1']
    #allocation7 [shape = 'u8[8192]{0}', space=vmem, size = 0x2000, scoped, tag = 'input window, operand 2']
    #allocation8 [shape = 'u8[2048]{0}', space=vmem, size = 0x800, scoped, tag = 'input window, operand 3']
    #allocation9 [shape = 's32[2]{0}', space=sflag, size = 0x8, scoped, tag = 'scoped memory for tpu_custom_call.1']
    #allocation10 [shape = 'u8[8192]{0}', space=vmem, size = 0x2000, scoped, tag = 'output window, operand 0']
    #allocation11 [shape = 'u8[8192]{0}', space=vmem, size = 0x2000, scoped, tag = 'output window, operand 1']
    #allocation12 [shape = 's32[2]{0}', space=sflag, size = 0x8, scoped, tag = 'scoped memory for tpu_custom_call.1']
    %11 = vsyncpa [#allocation3], 0
    %s12 = scalar_lea.sflag [#allocation3], 1
    %13 = vsyncpa %s12, 0
    %14 = vsyncpa [#allocation6], 0
    %s15 = scalar_lea.sflag [#allocation6], 1
    %16 = vsyncpa %s15, 0
    %17 = vsyncpa [#allocation9], 0
    %s18 = scalar_lea.sflag [#allocation9], 1
    %19 = vsyncpa %s18, 0
    %20 = vsyncpa [#allocation4], 0
    %s21 = scalar_lea.sflag [#allocation4], 1
    %22 = vsyncpa %s21, 0
    %23 = vsyncpa [#allocation12], 0
    %s24 = scalar_lea.sflag [#allocation12], 1
    %25 = vsyncpa %s24, 0
    loop: start=0, step=1, limit=4
    $region2: #{tpu_custom_call.1} parent=1 // loop_pre_header
      _
    $region3: #{tpu_custom_call.1} parent=1 // loop_header
      %s27 = sphi 0, %s31
      %p28 = scmp.ge.s32.totalorder %s27, 4
      %s34 = sphi 0, %s46
      %s35 = sphi 0, %s42
      %s36 = sphi 0, %s34
      %s37 = sphi 0, %s35
      %s38 = sphi 0, %s36
      %s39 = sphi 0, %s37
      %s51 = sphi 0, %s53
      %s54 = sphi 0, %s51
      %s55 = sphi 0, %s54
      %s71 = sphi 0, %s55
      %s77 = sphi 0, %s79
      %s80 = sphi 0, %s77
      %s81 = sphi 0, %s80
      %s97 = sphi 0, %s81
      %s103 = sphi 0, %s105
      %s106 = sphi 0, %s103
      %s107 = sphi 0, %s106
      %s123 = sphi 0, %s107
      %s131 = sphi 0, %s133
      %s134 = sphi 0, %s131
      %s135 = sphi 0, %s134
      %s151 = sphi 0, %s135
      %s159 = sphi 0, %s161
      %s162 = sphi 0, %s159
      %s163 = sphi 0, %s162
      %s179 = sphi 0, %s163
      %s187 = sphi 0, %s189
      %s190 = sphi 0, %s187
      %s191 = sphi 0, %s190
      %s207 = sphi 0, %s191
    $region4: #{tpu_custom_call.1} parent=1 // loop_header_branch
      %30 = sbr.rel (%p28) target = $region8
    $region5: #{tpu_custom_call.1} parent=1 // loop_body
      %s32 = ssub.s32 %s27, 1
      %s33 = ssub.s32 %s27, 2
      %s40 = sadd.s32 1, %s35
      %p41 = scmp.ge.s32.totalorder %s40, 1
      %s42 = scalar_select %p41, 0, %s40
      %s43 = sadd.s32 1, %s34
      %s44 = scalar_select %p41, %s43, %s34
      %p45 = scmp.ge.s32.totalorder %s44, 2
      %s46 = scalar_select %p45, 0, %s44
      %s47 = ssub.s32 %s34, %s46
      %s48 = ssub.s32 %s35, %s42
      %s49 = sor.u32 %s47, %s48
      %p50 = scmp.eq.s32.totalorder %s49, 0
      %s52 = sadd.s32 %s51, 1
      %s53 = scalar_select %p50, %s51, %s52
      %p56 = pneg %p50
      %p57 = scmp.eq.s32.totalorder %s27, 1
      %p58 = por %p56, %p57
      %p59 = scmp.ne.s32.totalorder %s51, %s54
      %p60 = scmp.eq.s32.totalorder %s27, 0
      %p61 = por %p59, %p60
      %p62 = scmp.ne.s32.totalorder %s51, %s54
      %p63 = scmp.eq.s32.totalorder %s32, 1
      %p64 = por %p62, %p63
      %p65 = scmp.ne.s32.totalorder %s54, %s55
      %p66 = scmp.eq.s32.totalorder %s32, 0
      %p67 = por %p65, %p66
      %p68 = scmp.ne.s32.totalorder %s54, %s55
      %p69 = scmp.eq.s32.totalorder %s33, 1
      %p70 = por %p68, %p69
      %p72 = scmp.ne.s32.totalorder %s55, %s71
      %p73 = scmp.eq.s32.totalorder %s33, 0
      %p74 = por %p72, %p73
      %s75 = ssub.s32 %s34, %s46
      %p76 = scmp.eq.s32.totalorder %s75, 0
      %s78 = sadd.s32 %s77, 1
      %s79 = scalar_select %p76, %s77, %s78
      %p82 = pneg %p76
      %p83 = scmp.eq.s32.totalorder %s27, 1
      %p84 = por %p82, %p83
      %p85 = scmp.ne.s32.totalorder %s77, %s80
      %p86 = scmp.eq.s32.totalorder %s27, 0
      %p87 = por %p85, %p86
      %p88 = scmp.ne.s32.totalorder %s77, %s80
      %p89 = scmp.eq.s32.totalorder %s32, 1
      %p90 = por %p88, %p89
      %p91 = scmp.ne.s32.totalorder %s80, %s81
      %p92 = scmp.eq.s32.totalorder %s32, 0
      %p93 = por %p91, %p92
      %p94 = scmp.ne.s32.totalorder %s80, %s81
      %p95 = scmp.eq.s32.totalorder %s33, 1
      %p96 = por %p94, %p95
      %p98 = scmp.ne.s32.totalorder %s81, %s97
      %p99 = scmp.eq.s32.totalorder %s33, 0
      %p100 = por %p98, %p99
      %s101 = ssub.s32 %s34, %s46
      %p102 = scmp.eq.s32.totalorder %s101, 0
      %s104 = sadd.s32 %s103, 1
      %s105 = scalar_select %p102, %s103, %s104
      %p108 = pneg %p102
      %p109 = scmp.eq.s32.totalorder %s27, 1
      %p110 = por %p108, %p109
      %p111 = scmp.ne.s32.totalorder %s103, %s106
      %p112 = scmp.eq.s32.totalorder %s27, 0
      %p113 = por %p111, %p112
      %p114 = scmp.ne.s32.totalorder %s103, %s106
      %p115 = scmp.eq.s32.totalorder %s32, 1
      %p116 = por %p114, %p115
      %p117 = scmp.ne.s32.totalorder %s106, %s107
      %p118 = scmp.eq.s32.totalorder %s32, 0
      %p119 = por %p117, %p118
      %p120 = scmp.ne.s32.totalorder %s106, %s107
      %p121 = scmp.eq.s32.totalorder %s33, 1
      %p122 = por %p120, %p121
      %p124 = scmp.ne.s32.totalorder %s107, %s123
      %p125 = scmp.eq.s32.totalorder %s33, 0
      %p126 = por %p124, %p125
      %s127 = ssub.s32 %s34, %s46
      %s128 = ssub.s32 %s35, %s42
      %s129 = sor.u32 %s127, %s128
      %p130 = scmp.eq.s32.totalorder %s129, 0
      %s132 = sadd.s32 %s131, 1
      %s133 = scalar_select %p130, %s131, %s132
      %p136 = pneg %p130
      %p137 = scmp.eq.s32.totalorder %s27, 1
      %p138 = por %p136, %p137
      %p139 = scmp.ne.s32.totalorder %s131, %s134
      %p140 = scmp.eq.s32.totalorder %s27, 0
      %p141 = por %p139, %p140
      %p142 = scmp.ne.s32.totalorder %s131, %s134
      %p143 = scmp.eq.s32.totalorder %s32, 1
      %p144 = por %p142, %p143
      %p145 = scmp.ne.s32.totalorder %s134, %s135
      %p146 = scmp.eq.s32.totalorder %s32, 0
      %p147 = por %p145, %p146
      %p148 = scmp.ne.s32.totalorder %s134, %s135
      %p149 = scmp.eq.s32.totalorder %s33, 1
      %p150 = por %p148, %p149
      %p152 = scmp.ne.s32.totalorder %s135, %s151
      %p153 = scmp.eq.s32.totalorder %s33, 0
      %p154 = por %p152, %p153
      %s155 = ssub.s32 %s34, %s46
      %s156 = ssub.s32 %s35, %s42
      %s157 = sor.u32 %s155, %s156
      %p158 = scmp.eq.s32.totalorder %s157, 0
      %s160 = sadd.s32 %s159, 1
      %s161 = scalar_select %p158, %s159, %s160
      %p164 = pneg %p158
      %p165 = scmp.eq.s32.totalorder %s27, 1
      %p166 = por %p164, %p165
      %p167 = scmp.ne.s32.totalorder %s159, %s162
      %p168 = scmp.eq.s32.totalorder %s27, 0
      %p169 = por %p167, %p168
      %p170 = scmp.ne.s32.totalorder %s159, %s162
      %p171 = scmp.eq.s32.totalorder %s32, 1
      %p172 = por %p170, %p171
      %p173 = scmp.ne.s32.totalorder %s162, %s163
      %p174 = scmp.eq.s32.totalorder %s32, 0
      %p175 = por %p173, %p174
      %p176 = scmp.ne.s32.totalorder %s162, %s163
      %p177 = scmp.eq.s32.totalorder %s33, 1
      %p178 = por %p176, %p177
      %p180 = scmp.ne.s32.totalorder %s163, %s179
      %p181 = scmp.eq.s32.totalorder %s33, 0
      %p182 = por %p180, %p181
      %s183 = ssub.s32 %s34, %s46
      %s184 = ssub.s32 %s35, %s42
      %s185 = sor.u32 %s183, %s184
      %p186 = scmp.eq.s32.totalorder %s185, 0
      %s188 = sadd.s32 %s187, 1
      %s189 = scalar_select %p186, %s187, %s188
      %p192 = pneg %p186
      %p193 = scmp.eq.s32.totalorder %s27, 1
      %p194 = por %p192, %p193
      %p195 = scmp.ne.s32.totalorder %s187, %s190
      %p196 = scmp.eq.s32.totalorder %s27, 0
      %p197 = por %p195, %p196
      %p198 = scmp.ne.s32.totalorder %s187, %s190
      %p199 = scmp.eq.s32.totalorder %s32, 1
      %p200 = por %p198, %p199
      %p201 = scmp.ne.s32.totalorder %s190, %s191
      %p202 = scmp.eq.s32.totalorder %s32, 0
      %p203 = por %p201, %p202
      %p204 = scmp.ne.s32.totalorder %s190, %s191
      %p205 = scmp.eq.s32.totalorder %s33, 1
      %p206 = por %p204, %p205
      %p208 = scmp.ne.s32.totalorder %s191, %s207
      %p209 = scmp.eq.s32.totalorder %s33, 0
      %p210 = por %p208, %p209
      %p211 = scmp.le.s32.totalorder 1, %s27
      %p212 = scmp.lt.s32.totalorder %s27, 3
      %p213 = pnand %p211, %p212
      %p214 = pneg %p213
      // Predicated region
      $region9: #{tpu_custom_call.1} parent=5 // pred_check
        _
      $region10: #{tpu_custom_call.1} parent=5 // pred_check_branch
        %216 = sbr.rel (%p213) target = $region12
      $region11: #{tpu_custom_call.1} parent=5 // pred_region
        %s217 = ssub.s32 %s27, 1
      $region12: #{tpu_custom_call.1} parent=5 // pred_fallthru
        _
      %p218 = scmp.lt.s32.totalorder %s27, 2
      // Predicated region
      $region13: #{tpu_custom_call.1} parent=5 // pred_check
        %p219 = pneg %p218
      $region14: #{tpu_custom_call.1} parent=5 // pred_check_branch
        %221 = sbr.rel (%p219) target = $region16
      $region15: #{tpu_custom_call.1} parent=5 // pred_region
        // Predicated region
        $region17: #{tpu_custom_call.1} parent=15 // pred_check
          %p222 = pneg %p61
        $region18: #{tpu_custom_call.1} parent=15 // pred_check_branch
          %224 = sbr.rel (%p222) target = $region20
        $region19: #{tpu_custom_call.1} parent=15 // pred_region
          %s225 = sand.u32 %s51, 1
          %s226 = scalar_lea.sflag [#allocation3], %s225
          %s227 = sand.u32 %s51, 1
          %s228 = smul.addr %s227, 8
          %s229 = scalar_lea.vmem [#allocation2], %s228
          %s231 = ssub.s32 128, 128
          %232 = vsyncadd %s226, %s231
          %s233 = sadd.s32 %s35, %s34
          %s234 = smul.addr %s233, 128
          %s235 = scalar_lea.hbm %s0, %s234
          %s237 = sshll.u32 %s229, 4
          %s238 = int_to_ptr.vmem [resolvable:$true] %s237
          %240 = dma.hbm_to_vmem [thread:$0]  %s235, 128, %s238, %s226
        $region20: #{tpu_custom_call.1} parent=15 // pred_fallthru
          _
        // Predicated region
        $region21: #{tpu_custom_call.1} parent=15 // pred_check
          %p241 = pneg %p87
        $region22: #{tpu_custom_call.1} parent=15 // pred_check_branch
          %243 = sbr.rel (%p241) target = $region24
        $region23: #{tpu_custom_call.1} parent=15 // pred_region
          %s244 = sand.u32 %s27, 1
          %s245 = scalar_lea.sflag [#allocation6], %s244
          %s246 = sand.u32 %s77, 1
          %s247 = smul.addr %s246, 8
          %s248 = scalar_lea.vmem [#allocation5], %s247
          %s250 = ssub.s32 128, 128
          %251 = vsyncadd %s245, %s250
          %s252 = smul.addr %s34, 128
          %s253 = scalar_lea.hbm %s1, %s252
          %s255 = sshll.u32 %s248, 4
          %s256 = int_to_ptr.vmem [resolvable:$true] %s255
          %258 = dma.hbm_to_vmem [thread:$0]  %s253, 128, %s256, %s245
        $region24: #{tpu_custom_call.1} parent=15 // pred_fallthru
          _
        // Predicated region
        $region25: #{tpu_custom_call.1} parent=15 // pred_check
          %p259 = pneg %p113
        $region26: #{tpu_custom_call.1} parent=15 // pred_check_branch
          %261 = sbr.rel (%p259) target = $region28
        $region27: #{tpu_custom_call.1} parent=15 // pred_region
          %s262 = sand.u32 %s27, 1
          %s263 = scalar_lea.sflag [#allocation6], %s262
          %s264 = sand.u32 %s103, 1
          %s265 = smul.addr %s264, 8
          %s266 = scalar_lea.vmem [#allocation7], %s265
          %s268 = ssub.s32 128, 128
          %269 = vsyncadd %s263, %s268
          %s270 = smul.addr %s34, 128
          %s271 = scalar_lea.hbm %s2, %s270
          %s273 = sshll.u32 %s266, 4
          %s274 = int_to_ptr.vmem [resolvable:$true] %s273
          %276 = dma.hbm_to_vmem [thread:$0]  %s271, 128, %s274, %s263
        $region28: #{tpu_custom_call.1} parent=15 // pred_fallthru
          _
        // Predicated region
        $region29: #{tpu_custom_call.1} parent=15 // pred_check
          %p277 = pneg %p141
        $region30: #{tpu_custom_call.1} parent=15 // pred_check_branch
          %279 = sbr.rel (%p277) target = $region32
        $region31: #{tpu_custom_call.1} parent=15 // pred_region
          %s280 = sand.u32 %s131, 1
          %s281 = scalar_lea.sflag [#allocation9], %s280
          %s282 = sand.u32 %s131, 1
          %s283 = smul.addr %s282, 2
          %s284 = scalar_lea.vmem [#allocation8], %s283
          %s286 = ssub.s32 32, 32
          %287 = vsyncadd %s281, %s286
          %s288 = sadd.s32 %s35, %s34
          %s289 = smul.addr %s288, 32
          %s290 = scalar_lea.hbm %s3, %s289
          %s292 = sshll.u32 %s284, 4
          %s293 = int_to_ptr.vmem [resolvable:$true] %s292
          %295 = dma.hbm_to_vmem [thread:$0]  %s290, 32, %s293, %s281
        $region32: #{tpu_custom_call.1} parent=15 // pred_fallthru
          _
      $region16: #{tpu_custom_call.1} parent=5 // pred_fallthru
        _
      %p296 = scmp.le.s32.totalorder 1, %s27
      %p297 = scmp.lt.s32.totalorder %s27, 3
      %p298 = pnand %p296, %p297
      %p299 = pneg %p298
      // Predicated region
      $region33: #{tpu_custom_call.1} parent=5 // pred_check
        _
      $region34: #{tpu_custom_call.1} parent=5 // pred_check_branch
        %301 = sbr.rel (%p298) target = $region36
      $region35: #{tpu_custom_call.1} parent=5 // pred_region
        %s302 = ssub.s32 %s27, 1
        %s303 = sand.u32 %s54, 1
        %s304 = scalar_lea.sflag [#allocation3], %s303
        %s305 = sand.u32 %s54, 1
        %s306 = smul.addr %s305, 8
        %s307 = scalar_lea.vmem [#allocation2], %s306
        // Predicated region
        $region37: #{tpu_custom_call.1} parent=35 // pred_check
          %p308 = pneg %p67
        $region38: #{tpu_custom_call.1} parent=35 // pred_check_branch
          %310 = sbr.rel (%p308) target = $region40
        $region39: #{tpu_custom_call.1} parent=35 // pred_region
          %311 = dma.done %s304, 128
        $region40: #{tpu_custom_call.1} parent=35 // pred_fallthru
          _
        %s312 = sand.u32 %s32, 1
        %s313 = scalar_lea.sflag [#allocation6], %s312
        %s314 = sand.u32 %s80, 1
        %s315 = smul.addr %s314, 8
        %s316 = scalar_lea.vmem [#allocation5], %s315
        // Predicated region
        $region41: #{tpu_custom_call.1} parent=35 // pred_check
          %p317 = pneg %p93
        $region42: #{tpu_custom_call.1} parent=35 // pred_check_branch
          %319 = sbr.rel (%p317) target = $region44
        $region43: #{tpu_custom_call.1} parent=35 // pred_region
          %320 = dma.done %s313, 128
        $region44: #{tpu_custom_call.1} parent=35 // pred_fallthru
          _
        %s321 = sand.u32 %s32, 1
        %s322 = scalar_lea.sflag [#allocation6], %s321
        %s323 = sand.u32 %s106, 1
        %s324 = smul.addr %s323, 8
        %s325 = scalar_lea.vmem [#allocation7], %s324
        // Predicated region
        $region45: #{tpu_custom_call.1} parent=35 // pred_check
          %p326 = pneg %p119
        $region46: #{tpu_custom_call.1} parent=35 // pred_check_branch
          %328 = sbr.rel (%p326) target = $region48
        $region47: #{tpu_custom_call.1} parent=35 // pred_region
          %329 = dma.done %s322, 128
        $region48: #{tpu_custom_call.1} parent=35 // pred_fallthru
          _
        %s330 = sand.u32 %s134, 1
        %s331 = scalar_lea.sflag [#allocation9], %s330
        %s332 = sand.u32 %s134, 1
        %s333 = smul.addr %s332, 2
        %s334 = scalar_lea.vmem [#allocation8], %s333
        // Predicated region
        $region49: #{tpu_custom_call.1} parent=35 // pred_check
          %p335 = pneg %p147
        $region50: #{tpu_custom_call.1} parent=35 // pred_check_branch
          %337 = sbr.rel (%p335) target = $region52
        $region51: #{tpu_custom_call.1} parent=35 // pred_region
          %338 = dma.done %s331, 32
        $region52: #{tpu_custom_call.1} parent=35 // pred_fallthru
          _
        %s339 = sand.u32 %s54, 1
        %s340 = scalar_lea.sflag [#allocation3], %s339
        %s341 = sand.u32 %s54, 1
        %s342 = smul.addr %s341, 8
        %s343 = scalar_lea.vmem [#allocation2], %s342
        %p344 = pneg %p67
        %p345 = pneg %p64
        %s346 = sand.u32 %s32, 1
        %s347 = scalar_lea.sflag [#allocation6], %s346
        %s348 = sand.u32 %s80, 1
        %s349 = smul.addr %s348, 8
        %s350 = scalar_lea.vmem [#allocation5], %s349
        %p351 = pneg %p93
        %p352 = pneg %p90
        %s353 = sand.u32 %s32, 1
        %s354 = scalar_lea.sflag [#allocation6], %s353
        %s355 = sand.u32 %s106, 1
        %s356 = smul.addr %s355, 8
        %s357 = scalar_lea.vmem [#allocation7], %s356
        %p358 = pneg %p119
        %p359 = pneg %p116
        %s360 = sand.u32 %s134, 1
        %s361 = scalar_lea.sflag [#allocation9], %s360
        %s362 = sand.u32 %s134, 1
        %s363 = smul.addr %s362, 2
        %s364 = scalar_lea.vmem [#allocation8], %s363
        %p365 = pneg %p147
        %p366 = pneg %p144
        %p367 = pneg %p175
        %p368 = pneg %p172
        %s369 = sand.u32 %s162, 1
        %s370 = scalar_lea.sflag [#allocation4], %s369
        %s371 = sand.u32 %s162, 1
        %s372 = smul.addr %s371, 8
        %s373 = scalar_lea.vmem [#allocation10], %s372
        %p374 = pneg %p203
        %p375 = pneg %p200
        %s376 = sand.u32 %s190, 1
        %s377 = scalar_lea.sflag [#allocation12], %s376
        %s378 = sand.u32 %s190, 1
        %s379 = smul.addr %s378, 8
        %s380 = scalar_lea.vmem [#allocation11], %s379
        %v383 = vld [vmem:[%s307] sm:$0xff]
        %v384 = vld [vmem:[%s316] sm:$0xff]
        %v385 = vld [vmem:[%s325] sm:$0xff]
        %v386 = vmul.f32 %v383, 0.17677669
        %vm387 = vcmask 261120
        %v389 = vsel %vm387, %v386, 0
        %v392 = vsel %vm387, %v384, 0
        %394 = vmatprep.subr.mxu0 0.0
        %395 = vmatpush1.xpose.msra.mxu0 %v392
        %396 = vmatprep.subr.mxu0 0.0
        %397 = vmatpush1.xpose.msra.mxu0 0.0
        %398 = vmatprep.subr.mxu0 0.0
        %399 = vmatpush1.xpose.msra.mxu0 0.0
        %400 = vmatprep.subr.mxu0 0.0
        %401 = vmatpush1.xpose.msra.mxu0 0.0
        %402 = vmatprep.subr.mxu0 0.0
        %403 = vmatpush1.xpose.msra.mxu0 0.0
        %404 = vmatprep.subr.mxu0 0.0
        %405 = vmatpush1.xpose.msra.mxu0 0.0
        %406 = vmatprep.subr.mxu0 0.0
        %407 = vmatpush1.xpose.msra.mxu0 0.0
        %408 = vmatprep.subr.mxu0 0.0
        %409 = vmatpush1.xpose.msra.mxu0 0.0
        %410 = vmatprep.subr.mxu0 0.0
        %411 = vmatpush1.xpose.msra.mxu0 0.0
        %412 = vmatprep.subr.mxu0 0.0
        %413 = vmatpush1.xpose.msra.mxu0 0.0
        %414 = vmatprep.subr.mxu0 0.0
        %415 = vmatpush1.xpose.msra.mxu0 0.0
        %416 = vmatprep.subr.mxu0 0.0
        %417 = vmatpush1.xpose.msra.mxu0 0.0
        %418 = vmatprep.subr.mxu0 0.0
        %419 = vmatpush1.xpose.msra.mxu0 0.0
        %420 = vmatprep.subr.mxu0 0.0
        %421 = vmatpush1.xpose.msra.mxu0 0.0
        %422 = vmatprep.subr.mxu0 0.0
        %423 = vmatpush1.xpose.msra.mxu0 0.0
        %424 = vmatprep.subr.mxu0 0.0
        %425 = vmatpush1.xpose.msra.mxu0 0.0
        %426 = vmatprep.subr.mxu0 0.0
        %427 = vmatpush1.xpose.msra.mxu0 0.0
        %428 = vmatprep.subr.mxu0 0.0
        %429 = vmatpush1.xpose.msra.mxu0 0.0
        %430 = vmatprep.subr.mxu0 0.0
        %431 = vmatpush1.xpose.msra.mxu0 0.0
        %432 = vmatprep.subr.mxu0 0.0
        %433 = vmatpush1.xpose.msra.mxu0 0.0
        %434 = vmatprep.subr.mxu0 0.0
        %435 = vmatpush1.xpose.msra.mxu0 0.0
        %436 = vmatprep.subr.mxu0 0.0
        %437 = vmatpush1.xpose.msra.mxu0 0.0
        %438 = vmatprep.subr.mxu0 0.0
        %439 = vmatpush1.xpose.msra.mxu0 0.0
        %440 = vmatprep.subr.mxu0 0.0
        %441 = vmatpush1.xpose.msra.mxu0 0.0
        %442 = vmatprep.subr.mxu0 0.0
        %443 = vmatpush1.xpose.msra.mxu0 0.0
        %444 = vmatprep.subr.mxu0 0.0
        %445 = vmatpush1.xpose.msra.mxu0 0.0
        %446 = vmatprep.subr.mxu0 0.0
        %447 = vmatpush1.xpose.msra.mxu0 0.0
        %448 = vmatprep.subr.mxu0 0.0
        %449 = vmatpush1.xpose.msra.mxu0 0.0
        %450 = vmatprep.subr.mxu0 0.0
        %451 = vmatpush1.xpose.msra.mxu0 0.0
        %452 = vmatprep.subr.mxu0 0.0
        %453 = vmatpush1.xpose.msra.mxu0 0.0
        %454 = vmatprep.subr.mxu0 0.0
        %455 = vmatpush1.xpose.msra.mxu0 0.0
        %456 = vmatprep.subr.mxu0 0.0
        %457 = vmatpush1.xpose.msra.mxu0 0.0
        %458 = vmatprep.mubr.f32.mxu0 0.0
        %459 = vmatmul.mubr.f32.gmra.mrb[0].mxu0 %v389
        %v460 = vpop.f32.mrb[0].mxu0
        %v461 = vadd.f32 0.0, %v460
        %v462 = vpop.f32.mrb[0].mxu0
        %463 = vdwg.mxu0
        %v464 = vld [vmem:[%s334] sm:$0x3]
        %vm465 = vnez %v464
        %v466 = vsel %vm465, 16843009, 0
        %v467 = vunpack.c.0.s8 %v466
        %vm468 = vcmp.ne.s32.totalorder %v467, 0
        %v469 = vsel %vm468, -1000000.0, %v461
        %vm470 = vcmask 64512
        %v471 = vsel %vm470, %v469, -inf
        %472 = vmax.xlane.f32.xlu0 %v471
        %v473 = vpop.xlane.xlu0 %472
        %v474 = vsub.f32 %v469, %v473
        %v475 = vmul.f32 %v474, 1.442695
        %v476 = vpow.pop %v475
        %v477 = vsel %vm470, %v476, 0.0
        %478 = vadd.xlane.f32.xlu0 %v477
        %v479 = vpop.xlane.xlu0 %478
        %v480 = vrcp.pop %v479
        %v481 = vmul.f32 %v476, %v480
        %v483 = vsel %vm470, %v481, 0
        %485 = vmatprep.subr.mxu0 0.0
        %486 = vmatpush1.msra.mxu0 %v385
        %487 = vmatprep.subr.mxu0 0.0
        %488 = vmatpush1.msra.mxu0 0.0
        %489 = vmatprep.subr.mxu0 0.0
        %490 = vmatpush1.msra.mxu0 0.0
        %491 = vmatprep.subr.mxu0 0.0
        %492 = vmatpush1.msra.mxu0 0.0
        %493 = vmatprep.subr.mxu0 0.0
        %494 = vmatpush1.msra.mxu0 0.0
        %495 = vmatprep.subr.mxu0 0.0
        %496 = vmatpush1.msra.mxu0 0.0
        %497 = vmatprep.subr.mxu0 0.0
        %498 = vmatpush1.msra.mxu0 0.0
        %499 = vmatprep.subr.mxu0 0.0
        %500 = vmatpush1.msra.mxu0 0.0
        %501 = vmatprep.subr.mxu0 0.0
        %502 = vmatpush1.msra.mxu0 0.0
        %503 = vmatprep.subr.mxu0 0.0
        %504 = vmatpush1.msra.mxu0 0.0
        %505 = vmatprep.subr.mxu0 0.0
        %506 = vmatpush1.msra.mxu0 0.0
        %507 = vmatprep.subr.mxu0 0.0
        %508 = vmatpush1.msra.mxu0 0.0
        %509 = vmatprep.subr.mxu0 0.0
        %510 = vmatpush1.msra.mxu0 0.0
        %511 = vmatprep.subr.mxu0 0.0
        %512 = vmatpush1.msra.mxu0 0.0
        %513 = vmatprep.subr.mxu0 0.0
        %514 = vmatpush1.msra.mxu0 0.0
        %515 = vmatprep.subr.mxu0 0.0
        %516 = vmatpush1.msra.mxu0 0.0
        %517 = vmatprep.subr.mxu0 0.0
        %518 = vmatpush1.msra.mxu0 0.0
        %519 = vmatprep.subr.mxu0 0.0
        %520 = vmatpush1.msra.mxu0 0.0
        %521 = vmatprep.subr.mxu0 0.0
        %522 = vmatpush1.msra.mxu0 0.0
        %523 = vmatprep.subr.mxu0 0.0
        %524 = vmatpush1.msra.mxu0 0.0
        %525 = vmatprep.subr.mxu0 0.0
        %526 = vmatpush1.msra.mxu0 0.0
        %527 = vmatprep.subr.mxu0 0.0
        %528 = vmatpush1.msra.mxu0 0.0
        %529 = vmatprep.subr.mxu0 0.0
        %530 = vmatpush1.msra.mxu0 0.0
        %531 = vmatprep.subr.mxu0 0.0
        %532 = vmatpush1.msra.mxu0 0.0
        %533 = vmatprep.subr.mxu0 0.0
        %534 = vmatpush1.msra.mxu0 0.0
        %535 = vmatprep.subr.mxu0 0.0
        %536 = vmatpush1.msra.mxu0 0.0
        %537 = vmatprep.subr.mxu0 0.0
        %538 = vmatpush1.msra.mxu0 0.0
        %539 = vmatprep.subr.mxu0 0.0
        %540 = vmatpush1.msra.mxu0 0.0
        %541 = vmatprep.subr.mxu0 0.0
        %542 = vmatpush1.msra.mxu0 0.0
        %543 = vmatprep.subr.mxu0 0.0
        %544 = vmatpush1.msra.mxu0 0.0
        %545 = vmatprep.subr.mxu0 0.0
        %546 = vmatpush1.msra.mxu0 0.0
        %547 = vmatprep.subr.mxu0 0.0
        %548 = vmatpush1.msra.mxu0 0.0
        %549 = vmatprep.mubr.f32.mxu0 0.0
        %550 = vmatmul.mubr.f32.gmra.mrb[0].mxu0 %v483
        %v551 = vpop.f32.mrb[0].mxu0
        %v552 = vadd.f32 0.0, %v551
        %v553 = vpop.f32.mrb[0].mxu0
        %554 = vdwg.mxu0
        %555 = vst.msk [vmem:[%s373] sm:$0xff] %vm387, %v552
        %556 = vst.msk [vmem:[%s380] sm:$0xff] %vm470, %v481
        %s557 = sand.u32 %s162, 1
        %s558 = scalar_lea.sflag [#allocation4], %s557
        %s559 = sand.u32 %s162, 1
        %s560 = smul.addr %s559, 8
        %s561 = scalar_lea.vmem [#allocation10], %s560
        %s562 = sand.u32 %s190, 1
        %s563 = scalar_lea.sflag [#allocation12], %s562
        %s564 = sand.u32 %s190, 1
        %s565 = smul.addr %s564, 8
        %s566 = scalar_lea.vmem [#allocation11], %s565
        // Predicated region
        $region53: #{tpu_custom_call.1} parent=35 // pred_check
          %p567 = pneg %p172
        $region54: #{tpu_custom_call.1} parent=35 // pred_check_branch
          %569 = sbr.rel (%p567) target = $region56
        $region55: #{tpu_custom_call.1} parent=35 // pred_region
          %s571 = ssub.s32 128, 128
          %572 = vsyncadd %s558, %s571
          %s573 = sadd.s32 %s37, %s36
          %s574 = smul.addr %s573, 128
          %s575 = scalar_lea.hbm %s4, %s574
          %s577 = sshll.u32 %s561, 4
          %s578 = int_to_ptr.vmem [resolvable:$true] %s577
          %580 = dma.vmem_to_hbm [thread:$0]  %s578, 128, %s575, %s558
        $region56: #{tpu_custom_call.1} parent=35 // pred_fallthru
          _
        // Predicated region
        $region57: #{tpu_custom_call.1} parent=35 // pred_check
          %p581 = pneg %p200
        $region58: #{tpu_custom_call.1} parent=35 // pred_check_branch
          %583 = sbr.rel (%p581) target = $region60
        $region59: #{tpu_custom_call.1} parent=35 // pred_region
          %s585 = ssub.s32 128, 128
          %586 = vsyncadd %s563, %s585
          %s587 = sadd.s32 %s37, %s36
          %s588 = smul.addr %s587, 128
          %s589 = scalar_lea.hbm %s5, %s588
          %s591 = sshll.u32 %s566, 4
          %s592 = int_to_ptr.vmem [resolvable:$true] %s591
          %594 = dma.vmem_to_hbm [thread:$0]  %s592, 128, %s589, %s563
        $region60: #{tpu_custom_call.1} parent=35 // pred_fallthru
          _
      $region36: #{tpu_custom_call.1} parent=5 // pred_fallthru
        _
      %p595 = scmp.le.s32.totalorder 2, %s27
      // Predicated region
      $region61: #{tpu_custom_call.1} parent=5 // pred_check
        %p596 = pneg %p595
      $region62: #{tpu_custom_call.1} parent=5 // pred_check_branch
        %598 = sbr.rel (%p596) target = $region64
      $region63: #{tpu_custom_call.1} parent=5 // pred_region
        %s599 = ssub.s32 %s27, 2
        // Predicated region
        $region65: #{tpu_custom_call.1} parent=63 // pred_check
          %p600 = pneg %p178
        $region66: #{tpu_custom_call.1} parent=63 // pred_check_branch
          %602 = sbr.rel (%p600) target = $region68
        $region67: #{tpu_custom_call.1} parent=63 // pred_region
          %s603 = sand.u32 %s163, 1
          %s604 = scalar_lea.sflag [#allocation4], %s603
          %s605 = sand.u32 %s163, 1
          %s606 = smul.addr %s605, 8
          %s607 = scalar_lea.vmem [#allocation10], %s606
          %608 = dma.done %s604, 128
        $region68: #{tpu_custom_call.1} parent=63 // pred_fallthru
          _
        // Predicated region
        $region69: #{tpu_custom_call.1} parent=63 // pred_check
          %p609 = pneg %p206
        $region70: #{tpu_custom_call.1} parent=63 // pred_check_branch
          %611 = sbr.rel (%p609) target = $region72
        $region71: #{tpu_custom_call.1} parent=63 // pred_region
          %s612 = sand.u32 %s191, 1
          %s613 = scalar_lea.sflag [#allocation12], %s612
          %s614 = sand.u32 %s191, 1
          %s615 = smul.addr %s614, 8
          %s616 = scalar_lea.vmem [#allocation11], %s615
          %617 = dma.done %s613, 128
        $region72: #{tpu_custom_call.1} parent=63 // pred_fallthru
          _
      $region64: #{tpu_custom_call.1} parent=5 // pred_fallthru
        _
    $region6: #{tpu_custom_call.1} parent=1 // loop_footer
      %s31 = sadd.s32 1, %s27
    $region7: #{tpu_custom_call.1} parent=1 // loop_footer_branch
      %26 = sbr.rel target = $region3
    $region8: #{tpu_custom_call.1} parent=1 // loop_exit
      _
    %618 = vsyncpa [#allocation3], 1
    %s619 = scalar_lea.sflag [#allocation3], 1
    %620 = vsyncpa %s619, 1
    %621 = vsyncpa [#allocation6], 1
    %s622 = scalar_lea.sflag [#allocation6], 1
    %623 = vsyncpa %s622, 1
    %624 = vsyncpa [#allocation9], 1
    %s625 = scalar_lea.sflag [#allocation9], 1
    %626 = vsyncpa %s625, 1
    %627 = vsyncpa [#allocation4], 1
    %s628 = scalar_lea.sflag [#allocation4], 1
    %629 = vsyncpa %s628, 1
    %630 = vsyncpa [#allocation12], 1
    %s631 = scalar_lea.sflag [#allocation12], 1
    %632 = vsyncpa %s631, 1

</llo_original>
